<compile_context>
chip_gen: v6e
topology: v6e:2x2x1
jax: 0.10.0
libtpu: 0.0.40
codegen_flags: <defaults>
</compile_context>

<pallas_src>
import jax
import jax.numpy as jnp
from jax import lax
from jax.experimental import pallas as pl
from jax.experimental.pallas import tpu as pltpu


def _decoder_kernel(xproj_ref, lens_ref, whh_ref, out_ref):
    # xproj_ref: (M, TB, Hp) time-major input projection (incl. both biases)
    # lens_ref : (TB, 1) int32 sequence lengths
    # whh_ref  : (Hp, Hp) recurrent weight (resident, 64 KiB at Hp=128)
    # out_ref  : (TB, M, Hp) batch-major output block (write-only)
    TB, M, Hp = out_ref.shape

    lens = lens_ref[...]                                   # (TB, 1) int32
    whh = whh_ref[...]                                     # (Hp, Hp) f32

    h = jnp.zeros((TB, Hp), jnp.float32)
    # Fully-unrolled static time loop: all ref slices below are static, each
    # step is a single (TB,Hp)@(Hp,Hp) MXU matmul + tanh + select.
    for t in range(M):
        pre = xproj_ref[t]                                 # dense (TB, Hp) load
        if t > 0:
            pre = pre + jnp.dot(h, whh, preferred_element_type=jnp.float32)
        h_new = jnp.tanh(pre)
        valid = lens > t                                   # (TB, 1) bool
        out_ref[:, t, :] = jnp.where(valid, h_new, 0.0)    # zero padded outputs
        h = jnp.where(valid, h_new, h)                     # freeze h when padded


def _round_up(x, m):
    return (x + m - 1) // m * m


def _pick_batch_tile(B, M, Hp, budget_bytes=40 * 1024 * 1024):
    """Largest multiple-of-8 batch tile (<=256) whose double-buffered xproj+out
    streams (4 * TB*M*Hp f32 buffers) fit the per-block VMEM budget."""
    per_row = 4 * M * Hp * 4
    tb_cap = max(8, (budget_bytes // per_row) // 8 * 8)
    return int(min(_round_up(B, 8), 256, tb_cap))


def transducer_rnn_decoder(tokens, mask, emb_table, w_ih, w_hh, bias):
    """tokens: [B, M] int, mask: [B, M] bool/int (True = data).
    Returns (out [B, M, H] f32, lens [B] i32)."""
    B, M = tokens.shape
    V, _E = emb_table.shape
    H = w_hh.shape[0]

    f32 = jnp.float32
    hi = jax.lax.Precision.HIGHEST

    Hp = _round_up(H, 128)                  # lane-dense hidden
    TB = _pick_batch_tile(B, M, Hp)         # batch tile (sublane rows per step)
    Bp = _round_up(B, TB)
    nb = Bp // TB

    # Packed-RNN lengths (prefix-mask semantics, as in pack_padded_sequence).
    lengths = mask.astype(jnp.int32).sum(-1)                       # (B,)

    # Precompose embedding with the input projection and fold in both biases:
    #   proj = emb @ W_ih^T + (b_ih + b_hh)        -> (V, H), padded to (V, Hp)
    proj = jnp.dot(emb_table.astype(f32), w_ih.astype(f32), precision=hi)
    proj = proj + bias.astype(f32)
    proj_p = jnp.zeros((V, Hp), f32).at[:, :H].set(proj)

    # Padded token ids (pad rows use id 0 — always a valid gather index).
    tok_p = jnp.zeros((Bp, M), jnp.int32).at[:B].set(tokens.astype(jnp.int32))
    # Real row gather replaces the one-hot MXU gather.  Gathering tokens.T
    # writes the result directly time-major — no separate transpose pass.
    xproj_tm = proj_p[tok_p.T]                                     # (M, Bp, Hp)

    lens_p = jnp.zeros((Bp, 1), jnp.int32).at[:B, 0].set(lengths)
    whh_p = jnp.zeros((Hp, Hp), f32).at[:H, :H].set(w_hh.astype(f32))

    # Explicit scoped-VMEM budget: 2x double-buffered (TB,M,Hp) f32 streams
    # (xproj in + out), double-buffered W_hh, lens, plus headroom.
    need = 4 * TB * M * Hp * 4 + 2 * Hp * Hp * 4 + 2 * TB * 4
    vmem_limit = int(min(max(int(need * 1.5) + (2 << 20), 32 << 20), 48 << 20))

    grid_spec = pltpu.PrefetchScalarGridSpec(
        num_scalar_prefetch=0,
        grid=(nb,),
        in_specs=[
            pl.BlockSpec((M, TB, Hp), lambda b: (0, b, 0)),   # xproj (time-major)
            pl.BlockSpec((TB, 1), lambda b: (b, 0)),          # lengths
            pl.BlockSpec((Hp, Hp), lambda b: (0, 0)),         # W_hh (64 KiB resident)
        ],
        out_specs=pl.BlockSpec((TB, M, Hp), lambda b: (b, 0, 0)),  # batch-major
    )

    out_p = pl.pallas_call(
        _decoder_kernel,
        out_shape=jax.ShapeDtypeStruct((Bp, M, Hp), f32),
        grid_spec=grid_spec,
        compiler_params=pltpu.CompilerParams(
            dimension_semantics=("parallel",),   # batch tiles; CORE_PARALLEL on v7x
            vmem_limit_bytes=vmem_limit),
    )(xproj_tm, lens_p, whh_p)

    return out_p[:B, :, :H], lengths


def _reference(tokens, mask, emb_table, w_ih, w_hh, bias):
    """Pure-JAX reference (PyTorch packed-RNN semantics: packed by lengths)."""
    hi = jax.lax.Precision.HIGHEST
    lengths = mask.astype(jnp.int32).sum(-1)                 # [B]
    x = emb_table[tokens]                                    # [B, M, E]
    B, M, _ = x.shape
    H = w_hh.shape[0]
    valid = (lax.broadcasted_iota(jnp.int32, (B, M), 1)
             < lengths[:, None])                             # [B, M]

    def step(h, inp):
        e_t, v_t = inp
        h_new = jnp.tanh(jnp.dot(e_t, w_ih, precision=hi)
                         + jnp.dot(h, w_hh, precision=hi) + bias[0])
        v = v_t[:, None]
        out_t = jnp.where(v, h_new, 0.0)
        h = jnp.where(v, h_new, h)
        return h, out_t

    h0 = jnp.zeros((B, H), jnp.float32)
    _, outs = lax.scan(step, h0, (jnp.transpose(x, (1, 0, 2)), valid.T))
    return jnp.transpose(outs, (1, 0, 2)), lengths


if __name__ == "__main__":
    # Module hyper-params (small): vocab=16, emb_dim=32, hidden=32,
    # rnn_type='rnn', n_layers=1.
    B, M = 2, 8
    V, E, H = 16, 32, 32

    key = jax.random.PRNGKey(0)
    k_tok, k_emb, k_wih, k_whh, k_bih, k_bhh = jax.random.split(key, 6)

    # Deterministic synthetic parameters (no checkpoint).
    emb_table = jax.random.normal(k_emb, (V, E), jnp.float32) * 0.1
    # PyTorch nn.RNN computes x @ W_ih^T; we store the transposed layout directly.
    w_ih = jax.random.normal(k_wih, (E, H), jnp.float32) * 0.1
    w_hh = jax.random.normal(k_whh, (H, H), jnp.float32) * 0.1
    bias = (jax.random.normal(k_bih, (1, H), jnp.float32) * 0.05
            + jax.random.normal(k_bhh, (1, H), jnp.float32) * 0.05)  # b_ih + b_hh

    # Inputs: token ids [B, M] and mask [B, M] (True for data, False for padding).
    tokens = jax.random.randint(k_tok, (B, M), 0, V, jnp.int32)
    lengths_true = jnp.array([M, 5], jnp.int32)
    mask = (lax.broadcasted_iota(jnp.int32, (B, M), 1)
            < lengths_true[:, None])                                  # (B, M) bool

    out, lens = transducer_rnn_decoder(tokens, mask, emb_table, w_ih, w_hh, bias)
    out = jax.block_until_ready(out)
    lens = jax.block_until_ready(lens)

    ref_out, ref_lens = _reference(tokens, mask, emb_table, w_ih, w_hh, bias)
    assert out.shape == (B, M, H) and lens.shape == (B,)
    assert jnp.all(lens == ref_lens), "length mismatch"
    assert jnp.allclose(out, ref_out, atol=1e-4, rtol=1e-4), "output mismatch"

    print("KERNEL_OK")
</pallas_src>

<mosaic_0001>
module attributes {stable_mosaic.version = 11 : i64} {
  func.func @_decoder_kernel(%arg0: i32, %arg1: memref<8x8x128xf32, #tpu.memory_space<vmem>>, %arg2: memref<8x1xi32, #tpu.memory_space<vmem>>, %arg3: memref<128x128xf32, #tpu.memory_space<vmem>>, %arg4: memref<8x8x128xf32, #tpu.memory_space<vmem>>) attributes {dimension_semantics = [#tpu.dimension_semantics<parallel>], iteration_bounds = array<i64: 1>, scalar_prefetch = 0 : i64, scratch_operands = 0 : i64, tpu.core_type = #tpu.core_type<tc>, window_params = [{transform_indices = @transform_0, window_bounds = array<i64: 8, 8, 128>}, {transform_indices = @transform_1, window_bounds = array<i64: 8, 1>}, {pipeline_mode = #tpu.pipeline_mode<synchronous>, transform_indices = @transform_2, window_bounds = array<i64: 128, 128>}, {transform_indices = @transform_3, window_bounds = array<i64: 8, 8, 128>}]} {
    %c0 = arith.constant 0 : index
    %c0_0 = arith.constant 0 : index
    %0 = vector.load %arg2[%c0, %c0_0] : memref<8x1xi32, #tpu.memory_space<vmem>>, vector<8x1xi32>
    %c0_1 = arith.constant 0 : index
    %c0_2 = arith.constant 0 : index
    %1 = vector.load %arg3[%c0_1, %c0_2] : memref<128x128xf32, #tpu.memory_space<vmem>>, vector<128x128xf32>
    %cst = arith.constant 0.000000e+00 : f32
    %2 = vector.broadcast %cst : f32 to vector<8x128xf32>
    %c0_3 = arith.constant 0 : index
    %c0_4 = arith.constant 0 : index
    %c0_5 = arith.constant 0 : index
    %3 = vector.load %arg1[%c0_3, %c0_4, %c0_5] : memref<8x8x128xf32, #tpu.memory_space<vmem>>, vector<1x8x128xf32>
    %4 = vector.shape_cast %3 : vector<1x8x128xf32> to vector<8x128xf32>
    %5 = math.tanh %4 : vector<8x128xf32>
    %c0_i32 = arith.constant 0 : i32
    %6 = vector.broadcast %c0_i32 : i32 to vector<8x1xi32>
    %7 = arith.cmpi sgt, %0, %6 : vector<8x1xi32>
    %cst_6 = arith.constant 0.000000e+00 : f32
    %8 = vector.shape_cast %7 : vector<8x1xi1> to vector<8x1xi1>
    %9 = vector.broadcast %8 : vector<8x1xi1> to vector<8x128xi1>
    %10 = vector.broadcast %cst_6 : f32 to vector<8x128xf32>
    %11 = arith.select %9, %5, %10 : vector<8x128xi1>, vector<8x128xf32>
    %c0_7 = arith.constant 0 : index
    %c0_8 = arith.constant 0 : index
    %c0_9 = arith.constant 0 : index
    %12 = vector.load %arg4[%c0_7, %c0_8, %c0_9] : memref<8x8x128xf32, #tpu.memory_space<vmem>>, vector<8x1x128xf32>
    %13 = vector.shape_cast %12 : vector<8x1x128xf32> to vector<8x128xf32>
    %14 = vector.shape_cast %11 : vector<8x128xf32> to vector<8x1x128xf32>
    tpu.vector_store %arg4[%c0_7, %c0_8, %c0_9], %14 {strides = array<i32>} : memref<8x8x128xf32, #tpu.memory_space<vmem>>, vector<8x1x128xf32>,
    %15 = vector.shape_cast %7 : vector<8x1xi1> to vector<8x1xi1>
    %16 = vector.broadcast %15 : vector<8x1xi1> to vector<8x128xi1>
    %17 = arith.select %16, %5, %2 : vector<8x128xi1>, vector<8x128xf32>
    %c1 = arith.constant 1 : index
    %c0_10 = arith.constant 0 : index
    %c0_11 = arith.constant 0 : index
    %18 = vector.load %arg1[%c1, %c0_10, %c0_11] : memref<8x8x128xf32, #tpu.memory_space<vmem>>, vector<1x8x128xf32>
    %19 = vector.shape_cast %18 : vector<1x8x128xf32> to vector<8x128xf32>
    %cst_12 = arith.constant dense<0.000000e+00> : vector<8x128xf32>
    %20 = tpu.matmul %17, %1, %cst_12 {dimension_numbers = #tpu.dot_dimension_numbers<[1], [0], [0], [1], [0, 0, 1, 1], [], []>} : vector<8x128xf32>, vector<128x128xf32>, vector<8x128xf32> -> vector<8x128xf32>
    %21 = arith.addf %19, %20 : vector<8x128xf32>
    %22 = math.tanh %21 : vector<8x128xf32>
    %c1_i32 = arith.constant 1 : i32
    %23 = vector.broadcast %c1_i32 : i32 to vector<8x1xi32>
    %24 = arith.cmpi sgt, %0, %23 : vector<8x1xi32>
    %cst_13 = arith.constant 0.000000e+00 : f32
    %25 = vector.shape_cast %24 : vector<8x1xi1> to vector<8x1xi1>
    %26 = vector.broadcast %25 : vector<8x1xi1> to vector<8x128xi1>
    %27 = vector.broadcast %cst_13 : f32 to vector<8x128xf32>
    %28 = arith.select %26, %22, %27 : vector<8x128xi1>, vector<8x128xf32>
    %c0_14 = arith.constant 0 : index
    %c1_15 = arith.constant 1 : index
    %c0_16 = arith.constant 0 : index
    %29 = vector.load %arg4[%c0_14, %c1_15, %c0_16] : memref<8x8x128xf32, #tpu.memory_space<vmem>>, vector<8x1x128xf32>
    %30 = vector.shape_cast %29 : vector<8x1x128xf32> to vector<8x128xf32>
    %31 = vector.shape_cast %28 : vector<8x128xf32> to vector<8x1x128xf32>
    tpu.vector_store %arg4[%c0_14, %c1_15, %c0_16], %31 {strides = array<i32>} : memref<8x8x128xf32, #tpu.memory_space<vmem>>, vector<8x1x128xf32>,
    %32 = vector.shape_cast %24 : vector<8x1xi1> to vector<8x1xi1>
    %33 = vector.broadcast %32 : vector<8x1xi1> to vector<8x128xi1>
    %34 = arith.select %33, %22, %17 : vector<8x128xi1>, vector<8x128xf32>
    %c2 = arith.constant 2 : index
    %c0_17 = arith.constant 0 : index
    %c0_18 = arith.constant 0 : index
    %35 = vector.load %arg1[%c2, %c0_17, %c0_18] : memref<8x8x128xf32, #tpu.memory_space<vmem>>, vector<1x8x128xf32>
    %36 = vector.shape_cast %35 : vector<1x8x128xf32> to vector<8x128xf32>
    %cst_19 = arith.constant dense<0.000000e+00> : vector<8x128xf32>
    %37 = tpu.matmul %34, %1, %cst_19 {dimension_numbers = #tpu.dot_dimension_numbers<[1], [0], [0], [1], [0, 0, 1, 1], [], []>} : vector<8x128xf32>, vector<128x128xf32>, vector<8x128xf32> -> vector<8x128xf32>
    %38 = arith.addf %36, %37 : vector<8x128xf32>
    %39 = math.tanh %38 : vector<8x128xf32>
    %c2_i32 = arith.constant 2 : i32
    %40 = vector.broadcast %c2_i32 : i32 to vector<8x1xi32>
    %41 = arith.cmpi sgt, %0, %40 : vector<8x1xi32>
    %cst_20 = arith.constant 0.000000e+00 : f32
    %42 = vector.shape_cast %41 : vector<8x1xi1> to vector<8x1xi1>
    %43 = vector.broadcast %42 : vector<8x1xi1> to vector<8x128xi1>
    %44 = vector.broadcast %cst_20 : f32 to vector<8x128xf32>
    %45 = arith.select %43, %39, %44 : vector<8x128xi1>, vector<8x128xf32>
    %c0_21 = arith.constant 0 : index
    %c2_22 = arith.constant 2 : index
    %c0_23 = arith.constant 0 : index
    %46 = vector.load %arg4[%c0_21, %c2_22, %c0_23] : memref<8x8x128xf32, #tpu.memory_space<vmem>>, vector<8x1x128xf32>
    %47 = vector.shape_cast %46 : vector<8x1x128xf32> to vector<8x128xf32>
    %48 = vector.shape_cast %45 : vector<8x128xf32> to vector<8x1x128xf32>
    tpu.vector_store %arg4[%c0_21, %c2_22, %c0_23], %48 {strides = array<i32>} : memref<8x8x128xf32, #tpu.memory_space<vmem>>, vector<8x1x128xf32>,
    %49 = vector.shape_cast %41 : vector<8x1xi1> to vector<8x1xi1>
    %50 = vector.broadcast %49 : vector<8x1xi1> to vector<8x128xi1>
    %51 = arith.select %50, %39, %34 : vector<8x128xi1>, vector<8x128xf32>
    %c3 = arith.constant 3 : index
    %c0_24 = arith.constant 0 : index
    %c0_25 = arith.constant 0 : index
    %52 = vector.load %arg1[%c3, %c0_24, %c0_25] : memref<8x8x128xf32, #tpu.memory_space<vmem>>, vector<1x8x128xf32>
    %53 = vector.shape_cast %52 : vector<1x8x128xf32> to vector<8x128xf32>
    %cst_26 = arith.constant dense<0.000000e+00> : vector<8x128xf32>
    %54 = tpu.matmul %51, %1, %cst_26 {dimension_numbers = #tpu.dot_dimension_numbers<[1], [0], [0], [1], [0, 0, 1, 1], [], []>} : vector<8x128xf32>, vector<128x128xf32>, vector<8x128xf32> -> vector<8x128xf32>
    %55 = arith.addf %53, %54 : vector<8x128xf32>
    %56 = math.tanh %55 : vector<8x128xf32>
    %c3_i32 = arith.constant 3 : i32
    %57 = vector.broadcast %c3_i32 : i32 to vector<8x1xi32>
    %58 = arith.cmpi sgt, %0, %57 : vector<8x1xi32>
    %cst_27 = arith.constant 0.000000e+00 : f32
    %59 = vector.shape_cast %58 : vector<8x1xi1> to vector<8x1xi1>
    %60 = vector.broadcast %59 : vector<8x1xi1> to vector<8x128xi1>
    %61 = vector.broadcast %cst_27 : f32 to vector<8x128xf32>
    %62 = arith.select %60, %56, %61 : vector<8x128xi1>, vector<8x128xf32>
    %c0_28 = arith.constant 0 : index
    %c3_29 = arith.constant 3 : index
    %c0_30 = arith.constant 0 : index
    %63 = vector.load %arg4[%c0_28, %c3_29, %c0_30] : memref<8x8x128xf32, #tpu.memory_space<vmem>>, vector<8x1x128xf32>
    %64 = vector.shape_cast %63 : vector<8x1x128xf32> to vector<8x128xf32>
    %65 = vector.shape_cast %62 : vector<8x128xf32> to vector<8x1x128xf32>
    tpu.vector_store %arg4[%c0_28, %c3_29, %c0_30], %65 {strides = array<i32>} : memref<8x8x128xf32, #tpu.memory_space<vmem>>, vector<8x1x128xf32>,
    %66 = vector.shape_cast %58 : vector<8x1xi1> to vector<8x1xi1>
    %67 = vector.broadcast %66 : vector<8x1xi1> to vector<8x128xi1>
    %68 = arith.select %67, %56, %51 : vector<8x128xi1>, vector<8x128xf32>
    %c4 = arith.constant 4 : index
    %c0_31 = arith.constant 0 : index
    %c0_32 = arith.constant 0 : index
    %69 = vector.load %arg1[%c4, %c0_31, %c0_32] : memref<8x8x128xf32, #tpu.memory_space<vmem>>, vector<1x8x128xf32>
    %70 = vector.shape_cast %69 : vector<1x8x128xf32> to vector<8x128xf32>
    %cst_33 = arith.constant dense<0.000000e+00> : vector<8x128xf32>
    %71 = tpu.matmul %68, %1, %cst_33 {dimension_numbers = #tpu.dot_dimension_numbers<[1], [0], [0], [1], [0, 0, 1, 1], [], []>} : vector<8x128xf32>, vector<128x128xf32>, vector<8x128xf32> -> vector<8x128xf32>
    %72 = arith.addf %70, %71 : vector<8x128xf32>
    %73 = math.tanh %72 : vector<8x128xf32>
    %c4_i32 = arith.constant 4 : i32
    %74 = vector.broadcast %c4_i32 : i32 to vector<8x1xi32>
    %75 = arith.cmpi sgt, %0, %74 : vector<8x1xi32>
    %cst_34 = arith.constant 0.000000e+00 : f32
    %76 = vector.shape_cast %75 : vector<8x1xi1> to vector<8x1xi1>
    %77 = vector.broadcast %76 : vector<8x1xi1> to vector<8x128xi1>
    %78 = vector.broadcast %cst_34 : f32 to vector<8x128xf32>
    %79 = arith.select %77, %73, %78 : vector<8x128xi1>, vector<8x128xf32>
    %c0_35 = arith.constant 0 : index
    %c4_36 = arith.constant 4 : index
    %c0_37 = arith.constant 0 : index
    %80 = vector.load %arg4[%c0_35, %c4_36, %c0_37] : memref<8x8x128xf32, #tpu.memory_space<vmem>>, vector<8x1x128xf32>
    %81 = vector.shape_cast %80 : vector<8x1x128xf32> to vector<8x128xf32>
    %82 = vector.shape_cast %79 : vector<8x128xf32> to vector<8x1x128xf32>
    tpu.vector_store %arg4[%c0_35, %c4_36, %c0_37], %82 {strides = array<i32>} : memref<8x8x128xf32, #tpu.memory_space<vmem>>, vector<8x1x128xf32>,
    %83 = vector.shape_cast %75 : vector<8x1xi1> to vector<8x1xi1>
    %84 = vector.broadcast %83 : vector<8x1xi1> to vector<8x128xi1>
    %85 = arith.select %84, %73, %68 : vector<8x128xi1>, vector<8x128xf32>
    %c5 = arith.constant 5 : index
    %c0_38 = arith.constant 0 : index
    %c0_39 = arith.constant 0 : index
    %86 = vector.load %arg1[%c5, %c0_38, %c0_39] : memref<8x8x128xf32, #tpu.memory_space<vmem>>, vector<1x8x128xf32>
    %87 = vector.shape_cast %86 : vector<1x8x128xf32> to vector<8x128xf32>
    %cst_40 = arith.constant dense<0.000000e+00> : vector<8x128xf32>
    %88 = tpu.matmul %85, %1, %cst_40 {dimension_numbers = #tpu.dot_dimension_numbers<[1], [0], [0], [1], [0, 0, 1, 1], [], []>} : vector<8x128xf32>, vector<128x128xf32>, vector<8x128xf32> -> vector<8x128xf32>
    %89 = arith.addf %87, %88 : vector<8x128xf32>
    %90 = math.tanh %89 : vector<8x128xf32>
    %c5_i32 = arith.constant 5 : i32
    %91 = vector.broadcast %c5_i32 : i32 to vector<8x1xi32>
    %92 = arith.cmpi sgt, %0, %91 : vector<8x1xi32>
    %cst_41 = arith.constant 0.000000e+00 : f32
    %93 = vector.shape_cast %92 : vector<8x1xi1> to vector<8x1xi1>
    %94 = vector.broadcast %93 : vector<8x1xi1> to vector<8x128xi1>
    %95 = vector.broadcast %cst_41 : f32 to vector<8x128xf32>
    %96 = arith.select %94, %90, %95 : vector<8x128xi1>, vector<8x128xf32>
    %c0_42 = arith.constant 0 : index
    %c5_43 = arith.constant 5 : index
    %c0_44 = arith.constant 0 : index
    %97 = vector.load %arg4[%c0_42, %c5_43, %c0_44] : memref<8x8x128xf32, #tpu.memory_space<vmem>>, vector<8x1x128xf32>
    %98 = vector.shape_cast %97 : vector<8x1x128xf32> to vector<8x128xf32>
    %99 = vector.shape_cast %96 : vector<8x128xf32> to vector<8x1x128xf32>
    tpu.vector_store %arg4[%c0_42, %c5_43, %c0_44], %99 {strides = array<i32>} : memref<8x8x128xf32, #tpu.memory_space<vmem>>, vector<8x1x128xf32>,
    %100 = vector.shape_cast %92 : vector<8x1xi1> to vector<8x1xi1>
    %101 = vector.broadcast %100 : vector<8x1xi1> to vector<8x128xi1>
    %102 = arith.select %101, %90, %85 : vector<8x128xi1>, vector<8x128xf32>
    %c6 = arith.constant 6 : index
    %c0_45 = arith.constant 0 : index
    %c0_46 = arith.constant 0 : index
    %103 = vector.load %arg1[%c6, %c0_45, %c0_46] : memref<8x8x128xf32, #tpu.memory_space<vmem>>, vector<1x8x128xf32>
    %104 = vector.shape_cast %103 : vector<1x8x128xf32> to vector<8x128xf32>
    %cst_47 = arith.constant dense<0.000000e+00> : vector<8x128xf32>
    %105 = tpu.matmul %102, %1, %cst_47 {dimension_numbers = #tpu.dot_dimension_numbers<[1], [0], [0], [1], [0, 0, 1, 1], [], []>} : vector<8x128xf32>, vector<128x128xf32>, vector<8x128xf32> -> vector<8x128xf32>
    %106 = arith.addf %104, %105 : vector<8x128xf32>
    %107 = math.tanh %106 : vector<8x128xf32>
    %c6_i32 = arith.constant 6 : i32
    %108 = vector.broadcast %c6_i32 : i32 to vector<8x1xi32>
    %109 = arith.cmpi sgt, %0, %108 : vector<8x1xi32>
    %cst_48 = arith.constant 0.000000e+00 : f32
    %110 = vector.shape_cast %109 : vector<8x1xi1> to vector<8x1xi1>
    %111 = vector.broadcast %110 : vector<8x1xi1> to vector<8x128xi1>
    %112 = vector.broadcast %cst_48 : f32 to vector<8x128xf32>
    %113 = arith.select %111, %107, %112 : vector<8x128xi1>, vector<8x128xf32>
    %c0_49 = arith.constant 0 : index
    %c6_50 = arith.constant 6 : index
    %c0_51 = arith.constant 0 : index
    %114 = vector.load %arg4[%c0_49, %c6_50, %c0_51] : memref<8x8x128xf32, #tpu.memory_space<vmem>>, vector<8x1x128xf32>
    %115 = vector.shape_cast %114 : vector<8x1x128xf32> to vector<8x128xf32>
    %116 = vector.shape_cast %113 : vector<8x128xf32> to vector<8x1x128xf32>
    tpu.vector_store %arg4[%c0_49, %c6_50, %c0_51], %116 {strides = array<i32>} : memref<8x8x128xf32, #tpu.memory_space<vmem>>, vector<8x1x128xf32>,
    %117 = vector.shape_cast %109 : vector<8x1xi1> to vector<8x1xi1>
    %118 = vector.broadcast %117 : vector<8x1xi1> to vector<8x128xi1>
    %119 = arith.select %118, %107, %102 : vector<8x128xi1>, vector<8x128xf32>
    %c7 = arith.constant 7 : index
    %c0_52 = arith.constant 0 : index
    %c0_53 = arith.constant 0 : index
    %120 = vector.load %arg1[%c7, %c0_52, %c0_53] : memref<8x8x128xf32, #tpu.memory_space<vmem>>, vector<1x8x128xf32>
    %121 = vector.shape_cast %120 : vector<1x8x128xf32> to vector<8x128xf32>
    %cst_54 = arith.constant dense<0.000000e+00> : vector<8x128xf32>
    %122 = tpu.matmul %119, %1, %cst_54 {dimension_numbers = #tpu.dot_dimension_numbers<[1], [0], [0], [1], [0, 0, 1, 1], [], []>} : vector<8x128xf32>, vector<128x128xf32>, vector<8x128xf32> -> vector<8x128xf32>
    %123 = arith.addf %121, %122 : vector<8x128xf32>
    %124 = math.tanh %123 : vector<8x128xf32>
    %c7_i32 = arith.constant 7 : i32
    %125 = vector.broadcast %c7_i32 : i32 to vector<8x1xi32>
    %126 = arith.cmpi sgt, %0, %125 : vector<8x1xi32>
    %cst_55 = arith.constant 0.000000e+00 : f32
    %127 = vector.shape_cast %126 : vector<8x1xi1> to vector<8x1xi1>
    %128 = vector.broadcast %127 : vector<8x1xi1> to vector<8x128xi1>
    %129 = vector.broadcast %cst_55 : f32 to vector<8x128xf32>
    %130 = arith.select %128, %124, %129 : vector<8x128xi1>, vector<8x128xf32>
    %c0_56 = arith.constant 0 : index
    %c7_57 = arith.constant 7 : index
    %c0_58 = arith.constant 0 : index
    %131 = vector.load %arg4[%c0_56, %c7_57, %c0_58] : memref<8x8x128xf32, #tpu.memory_space<vmem>>, vector<8x1x128xf32>
    %132 = vector.shape_cast %131 : vector<8x1x128xf32> to vector<8x128xf32>
    %133 = vector.shape_cast %130 : vector<8x128xf32> to vector<8x1x128xf32>
    tpu.vector_store %arg4[%c0_56, %c7_57, %c0_58], %133 {strides = array<i32>} : memref<8x8x128xf32, #tpu.memory_space<vmem>>, vector<8x1x128xf32>,
    return
  }
  func.func @transform_0(%arg0: i32) -> (i32, i32, i32) {
    %c0_i32 = arith.constant 0 : i32
    %c0_i32_0 = arith.constant 0 : i32
    %c0_i32_1 = arith.constant 0 : i32
    return %c0_i32, %arg0, %c0_i32_0 : i32, i32, i32
  }
  func.func @transform_1(%arg0: i32) -> (i32, i32) {
    %c0_i32 = arith.constant 0 : i32
    %c0_i32_0 = arith.constant 0 : i32
    return %arg0, %c0_i32 : i32, i32
  }
  func.func @transform_2(%arg0: i32) -> (i32, i32) {
    %c0_i32 = arith.constant 0 : i32
    %c0_i32_0 = arith.constant 0 : i32
    %c0_i32_1 = arith.constant 0 : i32
    return %c0_i32, %c0_i32_0 : i32, i32
  }
  func.func @transform_3(%arg0: i32) -> (i32, i32, i32) {
    %c0_i32 = arith.constant 0 : i32
    %c0_i32_0 = arith.constant 0 : i32
    %c0_i32_1 = arith.constant 0 : i32
    return %arg0, %c0_i32, %c0_i32_0 : i32, i32, i32
  }
}

</mosaic_0001>

<llo_original>
// kernel: tpu_custom_call.1
$region0: #{tpu_custom_call.1}
  #allocation0 [shape = 'u32[]', space=smem, size = 0x4, offset = 0x4, fixed_abs, tag = 'smem constant byte address 0x4 - core index']
  #allocation1 [shape = 'u32[144,128]{1,0:T(1,128)}', space=vmem, size = 0x12000, scoped, tag = 'internal scratch']
  %s0 = inlined_call_operand.hbm [shape: f32[8,8,128], index: 0, kind: input, shape index: {}]
  %s1 = inlined_call_operand.vmem [shape: s32[8,1], index: 1, kind: input, shape index: {}]
  %s2 = inlined_call_operand.hbm [shape: f32[128,128], index: 2, kind: input, shape index: {}]
  %s3 = inlined_call_operand.hbm [shape: f32[8,8,128], index: 3, kind: output, shape index: {}]
  %s4 = sld [smem:[#allocation0]]
  $region30: #{tpu_custom_call.1} parent=0
    _
  %s6 = ssub.s32 1, %s4
  %s7 = scalar_select 0, %s6, %s4
  $region1: #{tpu_custom_call.1} parent=0
    #allocation2 [shape = 'u8[32768]{0}', space=vmem, size = 0x8000, scoped, tag = 'input window, operand 0, single buffered']
    #allocation3 [shape = 's32[1]{0}', space=sflag, size = 0x4, scoped, tag = 'scoped memory for tpu_custom_call.1']
    #allocation4 [shape = 's32[1]{0}', space=sflag, size = 0x4, scoped, tag = 'scoped memory for tpu_custom_call.1']
    #allocation5 [shape = 'u8[65536]{0}', space=vmem, size = 0x10000, scoped, tag = 'input window, operand 2, single buffered']
    #allocation6 [shape = 's32[1]{0}', space=sflag, size = 0x4, scoped, tag = 'scoped memory for tpu_custom_call.1']
    #allocation7 [shape = 'u8[32768]{0}', space=vmem, size = 0x8000, scoped, tag = 'output window, operand 0, single buffered']
    %8 = vsyncpa [#allocation3], 0
    %9 = vsyncpa [#allocation6], 0
    %10 = vsyncpa [#allocation4], 0
    // Predicated region
    $region2: #{tpu_custom_call.1} parent=1 // pred_check
      _
    $region3: #{tpu_custom_call.1} parent=1 // pred_check_branch
      %12 = sbr.rel (0) target = $region5
    $region4: #{tpu_custom_call.1} parent=1 // pred_region
      %s14 = ssub.s32 1024, 1024
      %15 = vsyncadd [#allocation3], %s14
      %s16 = sshll.u32 [#allocation2], 4
      %s17 = int_to_ptr.vmem [resolvable:$true] %s16
      %22 = dma.hbm_to_vmem [thread:$0]  %s0, 1024, %s17, [#allocation3], 128, 128, 8
    $region5: #{tpu_custom_call.1} parent=1 // pred_fallthru
      _
    // Predicated region
    $region6: #{tpu_custom_call.1} parent=1 // pred_check
      _
    $region7: #{tpu_custom_call.1} parent=1 // pred_check_branch
      %24 = sbr.rel (0) target = $region9
    $region8: #{tpu_custom_call.1} parent=1 // pred_region
      _
    $region9: #{tpu_custom_call.1} parent=1 // pred_fallthru
      _
    // Predicated region
    $region10: #{tpu_custom_call.1} parent=1 // pred_check
      _
    $region11: #{tpu_custom_call.1} parent=1 // pred_check_branch
      %26 = sbr.rel (0) target = $region13
    $region12: #{tpu_custom_call.1} parent=1 // pred_region
      %s28 = ssub.s32 2048, 2048
      %29 = vsyncadd [#allocation6], %s28
      %s30 = sshll.u32 [#allocation5], 4
      %s31 = int_to_ptr.vmem [resolvable:$true] %s30
      %36 = dma.hbm_to_vmem [thread:$0]  %s2, 2048, %s31, [#allocation6], 128, 128, 8
    $region13: #{tpu_custom_call.1} parent=1 // pred_fallthru
      _
    // Predicated region
    $region14: #{tpu_custom_call.1} parent=1 // pred_check
      _
    $region15: #{tpu_custom_call.1} parent=1 // pred_check_branch
      %38 = sbr.rel (0) target = $region17
    $region16: #{tpu_custom_call.1} parent=1 // pred_region
      %39 = dma.done [#allocation3], 1024
    $region17: #{tpu_custom_call.1} parent=1 // pred_fallthru
      _
    // Predicated region
    $region18: #{tpu_custom_call.1} parent=1 // pred_check
      _
    $region19: #{tpu_custom_call.1} parent=1 // pred_check_branch
      %41 = sbr.rel (0) target = $region21
    $region20: #{tpu_custom_call.1} parent=1 // pred_region
      %42 = dma.done [#allocation6], 2048
    $region21: #{tpu_custom_call.1} parent=1 // pred_fallthru
      _
    %v43 = vld [vmem:[%s1] sm:$0xff]
    %v44 = vld [vmem:[#allocation5] sm:$0xff]
    %v45 = vld [vmem:[#allocation5 + $0x8] sm:$0xff]
    %v46 = vld [vmem:[#allocation5 + $0x10] sm:$0xff]
    %v47 = vld [vmem:[#allocation5 + $0x18] sm:$0xff]
    %v48 = vld [vmem:[#allocation5 + $0x20] sm:$0xff]
    %v49 = vld [vmem:[#allocation5 + $0x28] sm:$0xff]
    %v50 = vld [vmem:[#allocation5 + $0x30] sm:$0xff]
    %v51 = vld [vmem:[#allocation5 + $0x38] sm:$0xff]
    %v52 = vld [vmem:[#allocation5 + $0x40] sm:$0xff]
    %v53 = vld [vmem:[#allocation5 + $0x48] sm:$0xff]
    %v54 = vld [vmem:[#allocation5 + $0x50] sm:$0xff]
    %v55 = vld [vmem:[#allocation5 + $0x58] sm:$0xff]
    %v56 = vld [vmem:[#allocation5 + $0x60] sm:$0xff]
    %v57 = vld [vmem:[#allocation5 + $0x68] sm:$0xff]
    %v58 = vld [vmem:[#allocation5 + $0x70] sm:$0xff]
    %v59 = vld [vmem:[#allocation5 + $0x78] sm:$0xff]
    %v60 = vld [vmem:[#allocation2] sm:$0xff]
    %v61 = vtanh.pop %v60
    %vm62 = vcmp.gt.s32.totalorder %v43, 0
    %v63 = vsel %vm62, 1, 0
    %64 = vset.pattern.permute.xlu0 0
    %65 = vperm.xlu0 %64, %v63
    %v66 = vpop.permute.xlu0 %65
    %vm67 = vcmp.eq.s32.totalorder %v66, 1
    %v68 = vsel %vm67, %v61, 0.0
    %v70 = vcombine.high %v68, %v68
    %v72 = vunpack.c.l.s4 1966171168
    %v73 = vunpack.c.0.s8 %v72
    %v74 = vlaneseq
    %v75 = vshrl.u32 %v74, 7
    %v76 = vsub.s32 %v73, %v75
    %v77 = vrot.slane %v68, %v76
    %v79 = vunpack.c.l.s4 1966171168
    %v80 = vunpack.c.0.s8 %v79
    %v81 = vlaneseq
    %v82 = vshrl.u32 %v81, 7
    %v83 = vsub.s32 %v80, %v82
    %v84 = vrot.slane %v70, %v83
    %v85 = vcombine.high %v77, %v77
    %v86 = vcombine.high %v84, %v84
    %v88 = vunpack.c.l.s4 1966171168
    %v89 = vunpack.c.0.s8 %v88
    %v90 = vlaneseq
    %v91 = vshrl.u32 %v90, 7
    %v92 = vsub.s32 %v89, %v91
    %v93 = vrot.slane %v77, %v92
    %v95 = vunpack.c.l.s4 1966171168
    %v96 = vunpack.c.0.s8 %v95
    %v97 = vlaneseq
    %v98 = vshrl.u32 %v97, 7
    %v99 = vsub.s32 %v96, %v98
    %v100 = vrot.slane %v84, %v99
    %v102 = vunpack.c.l.s4 1966171168
    %v103 = vunpack.c.0.s8 %v102
    %v104 = vlaneseq
    %v105 = vshrl.u32 %v104, 7
    %v106 = vsub.s32 %v103, %v105
    %v107 = vrot.slane %v85, %v106
    %v109 = vunpack.c.l.s4 1966171168
    %v110 = vunpack.c.0.s8 %v109
    %v111 = vlaneseq
    %v112 = vshrl.u32 %v111, 7
    %v113 = vsub.s32 %v110, %v112
    %v114 = vrot.slane %v86, %v113
    %v115 = vcombine.high %v93, %v93
    %v116 = vcombine.high %v100, %v100
    %v117 = vcombine.high %v107, %v107
    %v118 = vcombine.high %v114, %v114
    %127 = vst [vmem:[#allocation7] sm:$0x1] %v93
    %128 = vst [vmem:[#allocation7 + $0x8] sm:$0x1] %v107
    %129 = vst [vmem:[#allocation7 + $0x10] sm:$0x1] %v115
    %130 = vst [vmem:[#allocation7 + $0x18] sm:$0x1] %v117
    %131 = vst [vmem:[#allocation7 + $0x20] sm:$0x1] %v100
    %132 = vst [vmem:[#allocation7 + $0x28] sm:$0x1] %v114
    %133 = vst [vmem:[#allocation7 + $0x30] sm:$0x1] %v116
    %134 = vst [vmem:[#allocation7 + $0x38] sm:$0x1] %v118
    %s135 = scalar_lea.vmem [#allocation2], 8
    %v136 = vld [vmem:[%s135] sm:$0xff]
    %137 = vmatprep.subr.mxu0 0.0
    %138 = vmatpush1.msra.mxu0 %v59
    %139 = vmatprep.subr.mxu0 0.0
    %140 = vmatpush1.msra.mxu0 %v58
    %141 = vmatprep.subr.mxu0 0.0
    %142 = vmatpush1.msra.mxu0 %v57
    %143 = vmatprep.subr.mxu0 0.0
    %144 = vmatpush1.msra.mxu0 %v56
    %145 = vmatprep.subr.mxu0 0.0
    %146 = vmatpush1.msra.mxu0 %v55
    %147 = vmatprep.subr.mxu0 0.0
    %148 = vmatpush1.msra.mxu0 %v54
    %149 = vmatprep.subr.mxu0 0.0
    %150 = vmatpush1.msra.mxu0 %v53
    %151 = vmatprep.subr.mxu0 0.0
    %152 = vmatpush1.msra.mxu0 %v52
    %153 = vmatprep.subr.mxu0 0.0
    %154 = vmatpush1.msra.mxu0 %v51
    %155 = vmatprep.subr.mxu0 0.0
    %156 = vmatpush1.msra.mxu0 %v50
    %157 = vmatprep.subr.mxu0 0.0
    %158 = vmatpush1.msra.mxu0 %v49
    %159 = vmatprep.subr.mxu0 0.0
    %160 = vmatpush1.msra.mxu0 %v48
    %161 = vmatprep.subr.mxu0 0.0
    %162 = vmatpush1.msra.mxu0 %v47
    %163 = vmatprep.subr.mxu0 0.0
    %164 = vmatpush1.msra.mxu0 %v46
    %165 = vmatprep.subr.mxu0 0.0
    %166 = vmatpush1.msra.mxu0 %v45
    %167 = vmatprep.subr.mxu0 0.0
    %168 = vmatpush1.msra.mxu0 %v44
    %169 = vmatprep.subr.mxu0 0.0
    %170 = vmatpush2.msra.mxu0 0.0
    %171 = vmatprep.subr.mxu0 0.0
    %172 = vmatpush2.msra.mxu0 0.0
    %173 = vmatprep.subr.mxu0 0.0
    %174 = vmatpush2.msra.mxu0 0.0
    %175 = vmatprep.subr.mxu0 0.0
    %176 = vmatpush2.msra.mxu0 0.0
    %177 = vmatprep.subr.mxu0 0.0
    %178 = vmatpush2.msra.mxu0 0.0
    %179 = vmatprep.subr.mxu0 0.0
    %180 = vmatpush2.msra.mxu0 0.0
    %181 = vmatprep.subr.mxu0 0.0
    %182 = vmatpush2.msra.mxu0 0.0
    %183 = vmatprep.subr.mxu0 0.0
    %184 = vmatpush2.msra.mxu0 0.0
    %185 = vmatprep.subr.mxu0 0.0
    %186 = vmatpush2.msra.mxu0 0.0
    %187 = vmatprep.subr.mxu0 0.0
    %188 = vmatpush2.msra.mxu0 0.0
    %189 = vmatprep.subr.mxu0 0.0
    %190 = vmatpush2.msra.mxu0 0.0
    %191 = vmatprep.subr.mxu0 0.0
    %192 = vmatpush2.msra.mxu0 0.0
    %193 = vmatprep.subr.mxu0 0.0
    %194 = vmatpush2.msra.mxu0 0.0
    %195 = vmatprep.subr.mxu0 0.0
    %196 = vmatpush2.msra.mxu0 0.0
    %197 = vmatprep.subr.mxu0 0.0
    %198 = vmatpush2.msra.mxu0 0.0
    %199 = vmatprep.subr.mxu0 0.0
    %200 = vmatpush2.msra.mxu0 0.0
    %201 = vmatprep.mubr.f32.mxu0 0.0
    %202 = vmatmul.mubr.f32.gmra.mxu0 %v68
    %v203 = vpop.f32.mrf.mxu0
    %v204 = vadd.f32 0.0, %v203
    %v205 = vpop.f32.mrf.mxu0
    %206 = vdwg.mxu0
    %v207 = vadd.f32 %v136, %v204
    %v208 = vtanh.pop %v207
    %vm209 = vcmp.gt.s32.totalorder %v43, 1
    %v210 = vsel %vm209, 1, 0
    %211 = vset.pattern.permute.xlu0 0
    %212 = vperm.xlu0 %211, %v210
    %v213 = vpop.permute.xlu0 %212
    %vm214 = vcmp.eq.s32.totalorder %v213, 1
    %v215 = vsel %vm214, %v208, 0.0
    %v217 = vcombine.high %v215, %v215
    %v219 = vunpack.c.l.s4 1966171168
    %v220 = vunpack.c.0.s8 %v219
    %v221 = vlaneseq
    %v222 = vshrl.u32 %v221, 7
    %v223 = vsub.s32 %v220, %v222
    %v224 = vrot.slane %v215, %v223
    %v226 = vunpack.c.l.s4 1966171168
    %v227 = vunpack.c.0.s8 %v226
    %v228 = vlaneseq
    %v229 = vshrl.u32 %v228, 7
    %v230 = vsub.s32 %v227, %v229
    %v231 = vrot.slane %v217, %v230
    %v232 = vcombine.high %v224, %v224
    %v233 = vcombine.high %v231, %v231
    %v235 = vunpack.c.l.s4 1966171168
    %v236 = vunpack.c.0.s8 %v235
    %v237 = vlaneseq
    %v238 = vshrl.u32 %v237, 7
    %v239 = vsub.s32 %v236, %v238
    %v240 = vrot.slane %v224, %v239
    %v242 = vunpack.c.l.s4 1966171168
    %v243 = vunpack.c.0.s8 %v242
    %v244 = vlaneseq
    %v245 = vshrl.u32 %v244, 7
    %v246 = vsub.s32 %v243, %v245
    %v247 = vrot.slane %v231, %v246
    %v249 = vunpack.c.l.s4 1966171168
    %v250 = vunpack.c.0.s8 %v249
    %v251 = vlaneseq
    %v252 = vshrl.u32 %v251, 7
    %v253 = vsub.s32 %v250, %v252
    %v254 = vrot.slane %v232, %v253
    %v256 = vunpack.c.l.s4 1966171168
    %v257 = vunpack.c.0.s8 %v256
    %v258 = vlaneseq
    %v259 = vshrl.u32 %v258, 7
    %v260 = vsub.s32 %v257, %v259
    %v261 = vrot.slane %v233, %v260
    %v262 = vcombine.high %v240, %v240
    %v263 = vcombine.high %v247, %v247
    %v264 = vcombine.high %v254, %v254
    %v265 = vcombine.high %v261, %v261
    %274 = vst [vmem:[#allocation7 + $0x1] sm:$0x1] %v240
    %275 = vst [vmem:[#allocation7 + $0x9] sm:$0x1] %v254
    %276 = vst [vmem:[#allocation7 + $0x11] sm:$0x1] %v262
    %277 = vst [vmem:[#allocation7 + $0x19] sm:$0x1] %v264
    %278 = vst [vmem:[#allocation7 + $0x21] sm:$0x1] %v247
    %279 = vst [vmem:[#allocation7 + $0x29] sm:$0x1] %v261
    %280 = vst [vmem:[#allocation7 + $0x31] sm:$0x1] %v263
    %281 = vst [vmem:[#allocation7 + $0x39] sm:$0x1] %v265
    %v282 = vsel %vm214, %v208, %v68
    %s283 = scalar_lea.vmem [#allocation2], 16
    %v284 = vld [vmem:[%s283] sm:$0xff]
    %285 = vmatprep.subr.mxu0 0.0
    %286 = vmatpush1.msra.mxu0 %v59
    %287 = vmatprep.subr.mxu0 0.0
    %288 = vmatpush1.msra.mxu0 %v58
    %289 = vmatprep.subr.mxu0 0.0
    %290 = vmatpush1.msra.mxu0 %v57
    %291 = vmatprep.subr.mxu0 0.0
    %292 = vmatpush1.msra.mxu0 %v56
    %293 = vmatprep.subr.mxu0 0.0
    %294 = vmatpush1.msra.mxu0 %v55
    %295 = vmatprep.subr.mxu0 0.0
    %296 = vmatpush1.msra.mxu0 %v54
    %297 = vmatprep.subr.mxu0 0.0
    %298 = vmatpush1.msra.mxu0 %v53
    %299 = vmatprep.subr.mxu0 0.0
    %300 = vmatpush1.msra.mxu0 %v52
    %301 = vmatprep.subr.mxu0 0.0
    %302 = vmatpush1.msra.mxu0 %v51
    %303 = vmatprep.subr.mxu0 0.0
    %304 = vmatpush1.msra.mxu0 %v50
    %305 = vmatprep.subr.mxu0 0.0
    %306 = vmatpush1.msra.mxu0 %v49
    %307 = vmatprep.subr.mxu0 0.0
    %308 = vmatpush1.msra.mxu0 %v48
    %309 = vmatprep.subr.mxu0 0.0
    %310 = vmatpush1.msra.mxu0 %v47
    %311 = vmatprep.subr.mxu0 0.0
    %312 = vmatpush1.msra.mxu0 %v46
    %313 = vmatprep.subr.mxu0 0.0
    %314 = vmatpush1.msra.mxu0 %v45
    %315 = vmatprep.subr.mxu0 0.0
    %316 = vmatpush1.msra.mxu0 %v44
    %317 = vmatprep.subr.mxu0 0.0
    %318 = vmatpush2.msra.mxu0 0.0
    %319 = vmatprep.subr.mxu0 0.0
    %320 = vmatpush2.msra.mxu0 0.0
    %321 = vmatprep.subr.mxu0 0.0
    %322 = vmatpush2.msra.mxu0 0.0
    %323 = vmatprep.subr.mxu0 0.0
    %324 = vmatpush2.msra.mxu0 0.0
    %325 = vmatprep.subr.mxu0 0.0
    %326 = vmatpush2.msra.mxu0 0.0
    %327 = vmatprep.subr.mxu0 0.0
    %328 = vmatpush2.msra.mxu0 0.0
    %329 = vmatprep.subr.mxu0 0.0
    %330 = vmatpush2.msra.mxu0 0.0
    %331 = vmatprep.subr.mxu0 0.0
    %332 = vmatpush2.msra.mxu0 0.0
    %333 = vmatprep.subr.mxu0 0.0
    %334 = vmatpush2.msra.mxu0 0.0
    %335 = vmatprep.subr.mxu0 0.0
    %336 = vmatpush2.msra.mxu0 0.0
    %337 = vmatprep.subr.mxu0 0.0
    %338 = vmatpush2.msra.mxu0 0.0
    %339 = vmatprep.subr.mxu0 0.0
    %340 = vmatpush2.msra.mxu0 0.0
    %341 = vmatprep.subr.mxu0 0.0
    %342 = vmatpush2.msra.mxu0 0.0
    %343 = vmatprep.subr.mxu0 0.0
    %344 = vmatpush2.msra.mxu0 0.0
    %345 = vmatprep.subr.mxu0 0.0
    %346 = vmatpush2.msra.mxu0 0.0
    %347 = vmatprep.subr.mxu0 0.0
    %348 = vmatpush2.msra.mxu0 0.0
    %349 = vmatprep.mubr.f32.mxu0 0.0
    %350 = vmatmul.mubr.f32.gmra.mxu0 %v282
    %v351 = vpop.f32.mrf.mxu0
    %v352 = vadd.f32 0.0, %v351
    %v353 = vpop.f32.mrf.mxu0
    %354 = vdwg.mxu0
    %v355 = vadd.f32 %v284, %v352
    %v356 = vtanh.pop %v355
    %vm357 = vcmp.gt.s32.totalorder %v43, 2
    %v358 = vsel %vm357, 1, 0
    %359 = vset.pattern.permute.xlu0 0
    %360 = vperm.xlu0 %359, %v358
    %v361 = vpop.permute.xlu0 %360
    %vm362 = vcmp.eq.s32.totalorder %v361, 1
    %v363 = vsel %vm362, %v356, 0.0
    %v365 = vcombine.high %v363, %v363
    %v367 = vunpack.c.l.s4 1966171168
    %v368 = vunpack.c.0.s8 %v367
    %v369 = vlaneseq
    %v370 = vshrl.u32 %v369, 7
    %v371 = vsub.s32 %v368, %v370
    %v372 = vrot.slane %v363, %v371
    %v374 = vunpack.c.l.s4 1966171168
    %v375 = vunpack.c.0.s8 %v374
    %v376 = vlaneseq
    %v377 = vshrl.u32 %v376, 7
    %v378 = vsub.s32 %v375, %v377
    %v379 = vrot.slane %v365, %v378
    %v380 = vcombine.high %v372, %v372
    %v381 = vcombine.high %v379, %v379
    %v383 = vunpack.c.l.s4 1966171168
    %v384 = vunpack.c.0.s8 %v383
    %v385 = vlaneseq
    %v386 = vshrl.u32 %v385, 7
    %v387 = vsub.s32 %v384, %v386
    %v388 = vrot.slane %v372, %v387
    %v390 = vunpack.c.l.s4 1966171168
    %v391 = vunpack.c.0.s8 %v390
    %v392 = vlaneseq
    %v393 = vshrl.u32 %v392, 7
    %v394 = vsub.s32 %v391, %v393
    %v395 = vrot.slane %v379, %v394
    %v397 = vunpack.c.l.s4 1966171168
    %v398 = vunpack.c.0.s8 %v397
    %v399 = vlaneseq
    %v400 = vshrl.u32 %v399, 7
    %v401 = vsub.s32 %v398, %v400
    %v402 = vrot.slane %v380, %v401
    %v404 = vunpack.c.l.s4 1966171168
    %v405 = vunpack.c.0.s8 %v404
    %v406 = vlaneseq
    %v407 = vshrl.u32 %v406, 7
    %v408 = vsub.s32 %v405, %v407
    %v409 = vrot.slane %v381, %v408
    %v410 = vcombine.high %v388, %v388
    %v411 = vcombine.high %v395, %v395
    %v412 = vcombine.high %v402, %v402
    %v413 = vcombine.high %v409, %v409
    %422 = vst [vmem:[#allocation7 + $0x2] sm:$0x1] %v388
    %423 = vst [vmem:[#allocation7 + $0xa] sm:$0x1] %v402
    %424 = vst [vmem:[#allocation7 + $0x12] sm:$0x1] %v410
    %425 = vst [vmem:[#allocation7 + $0x1a] sm:$0x1] %v412
    %426 = vst [vmem:[#allocation7 + $0x22] sm:$0x1] %v395
    %427 = vst [vmem:[#allocation7 + $0x2a] sm:$0x1] %v409
    %428 = vst [vmem:[#allocation7 + $0x32] sm:$0x1] %v411
    %429 = vst [vmem:[#allocation7 + $0x3a] sm:$0x1] %v413
    %v430 = vsel %vm362, %v356, %v282
    %s431 = scalar_lea.vmem [#allocation2], 24
    %v432 = vld [vmem:[%s431] sm:$0xff]
    %433 = vmatprep.subr.mxu0 0.0
    %434 = vmatpush1.msra.mxu0 %v59
    %435 = vmatprep.subr.mxu0 0.0
    %436 = vmatpush1.msra.mxu0 %v58
    %437 = vmatprep.subr.mxu0 0.0
    %438 = vmatpush1.msra.mxu0 %v57
    %439 = vmatprep.subr.mxu0 0.0
    %440 = vmatpush1.msra.mxu0 %v56
    %441 = vmatprep.subr.mxu0 0.0
    %442 = vmatpush1.msra.mxu0 %v55
    %443 = vmatprep.subr.mxu0 0.0
    %444 = vmatpush1.msra.mxu0 %v54
    %445 = vmatprep.subr.mxu0 0.0
    %446 = vmatpush1.msra.mxu0 %v53
    %447 = vmatprep.subr.mxu0 0.0
    %448 = vmatpush1.msra.mxu0 %v52
    %449 = vmatprep.subr.mxu0 0.0
    %450 = vmatpush1.msra.mxu0 %v51
    %451 = vmatprep.subr.mxu0 0.0
    %452 = vmatpush1.msra.mxu0 %v50
    %453 = vmatprep.subr.mxu0 0.0
    %454 = vmatpush1.msra.mxu0 %v49
    %455 = vmatprep.subr.mxu0 0.0
    %456 = vmatpush1.msra.mxu0 %v48
    %457 = vmatprep.subr.mxu0 0.0
    %458 = vmatpush1.msra.mxu0 %v47
    %459 = vmatprep.subr.mxu0 0.0
    %460 = vmatpush1.msra.mxu0 %v46
    %461 = vmatprep.subr.mxu0 0.0
    %462 = vmatpush1.msra.mxu0 %v45
    %463 = vmatprep.subr.mxu0 0.0
    %464 = vmatpush1.msra.mxu0 %v44
    %465 = vmatprep.subr.mxu0 0.0
    %466 = vmatpush2.msra.mxu0 0.0
    %467 = vmatprep.subr.mxu0 0.0
    %468 = vmatpush2.msra.mxu0 0.0
    %469 = vmatprep.subr.mxu0 0.0
    %470 = vmatpush2.msra.mxu0 0.0
    %471 = vmatprep.subr.mxu0 0.0
    %472 = vmatpush2.msra.mxu0 0.0
    %473 = vmatprep.subr.mxu0 0.0
    %474 = vmatpush2.msra.mxu0 0.0
    %475 = vmatprep.subr.mxu0 0.0
    %476 = vmatpush2.msra.mxu0 0.0
    %477 = vmatprep.subr.mxu0 0.0
    %478 = vmatpush2.msra.mxu0 0.0
    %479 = vmatprep.subr.mxu0 0.0
    %480 = vmatpush2.msra.mxu0 0.0
    %481 = vmatprep.subr.mxu0 0.0
    %482 = vmatpush2.msra.mxu0 0.0
    %483 = vmatprep.subr.mxu0 0.0
    %484 = vmatpush2.msra.mxu0 0.0
    %485 = vmatprep.subr.mxu0 0.0
    %486 = vmatpush2.msra.mxu0 0.0
    %487 = vmatprep.subr.mxu0 0.0
    %488 = vmatpush2.msra.mxu0 0.0
    %489 = vmatprep.subr.mxu0 0.0
    %490 = vmatpush2.msra.mxu0 0.0
    %491 = vmatprep.subr.mxu0 0.0
    %492 = vmatpush2.msra.mxu0 0.0
    %493 = vmatprep.subr.mxu0 0.0
    %494 = vmatpush2.msra.mxu0 0.0
    %495 = vmatprep.subr.mxu0 0.0
    %496 = vmatpush2.msra.mxu0 0.0
    %497 = vmatprep.mubr.f32.mxu0 0.0
    %498 = vmatmul.mubr.f32.gmra.mxu0 %v430
    %v499 = vpop.f32.mrf.mxu0
    %v500 = vadd.f32 0.0, %v499
    %v501 = vpop.f32.mrf.mxu0
    %502 = vdwg.mxu0
    %v503 = vadd.f32 %v432, %v500
    %v504 = vtanh.pop %v503
    %vm505 = vcmp.gt.s32.totalorder %v43, 3
    %v506 = vsel %vm505, 1, 0
    %507 = vset.pattern.permute.xlu0 0
    %508 = vperm.xlu0 %507, %v506
    %v509 = vpop.permute.xlu0 %508
    %vm510 = vcmp.eq.s32.totalorder %v509, 1
    %v511 = vsel %vm510, %v504, 0.0
    %v513 = vcombine.high %v511, %v511
    %v515 = vunpack.c.l.s4 1966171168
    %v516 = vunpack.c.0.s8 %v515
    %v517 = vlaneseq
    %v518 = vshrl.u32 %v517, 7
    %v519 = vsub.s32 %v516, %v518
    %v520 = vrot.slane %v511, %v519
    %v522 = vunpack.c.l.s4 1966171168
    %v523 = vunpack.c.0.s8 %v522
    %v524 = vlaneseq
    %v525 = vshrl.u32 %v524, 7
    %v526 = vsub.s32 %v523, %v525
    %v527 = vrot.slane %v513, %v526
    %v528 = vcombine.high %v520, %v520
    %v529 = vcombine.high %v527, %v527
    %v531 = vunpack.c.l.s4 1966171168
    %v532 = vunpack.c.0.s8 %v531
    %v533 = vlaneseq
    %v534 = vshrl.u32 %v533, 7
    %v535 = vsub.s32 %v532, %v534
    %v536 = vrot.slane %v520, %v535
    %v538 = vunpack.c.l.s4 1966171168
    %v539 = vunpack.c.0.s8 %v538
    %v540 = vlaneseq
    %v541 = vshrl.u32 %v540, 7
    %v542 = vsub.s32 %v539, %v541
    %v543 = vrot.slane %v527, %v542
    %v545 = vunpack.c.l.s4 1966171168
    %v546 = vunpack.c.0.s8 %v545
    %v547 = vlaneseq
    %v548 = vshrl.u32 %v547, 7
    %v549 = vsub.s32 %v546, %v548
    %v550 = vrot.slane %v528, %v549
    %v552 = vunpack.c.l.s4 1966171168
    %v553 = vunpack.c.0.s8 %v552
    %v554 = vlaneseq
    %v555 = vshrl.u32 %v554, 7
    %v556 = vsub.s32 %v553, %v555
    %v557 = vrot.slane %v529, %v556
    %v558 = vcombine.high %v536, %v536
    %v559 = vcombine.high %v543, %v543
    %v560 = vcombine.high %v550, %v550
    %v561 = vcombine.high %v557, %v557
    %570 = vst [vmem:[#allocation7 + $0x3] sm:$0x1] %v536
    %571 = vst [vmem:[#allocation7 + $0xb] sm:$0x1] %v550
    %572 = vst [vmem:[#allocation7 + $0x13] sm:$0x1] %v558
    %573 = vst [vmem:[#allocation7 + $0x1b] sm:$0x1] %v560
    %574 = vst [vmem:[#allocation7 + $0x23] sm:$0x1] %v543
    %575 = vst [vmem:[#allocation7 + $0x2b] sm:$0x1] %v557
    %576 = vst [vmem:[#allocation7 + $0x33] sm:$0x1] %v559
    %577 = vst [vmem:[#allocation7 + $0x3b] sm:$0x1] %v561
    %v578 = vsel %vm510, %v504, %v430
    %s579 = scalar_lea.vmem [#allocation2], 32
    %v580 = vld [vmem:[%s579] sm:$0xff]
    %581 = vmatprep.subr.mxu0 0.0
    %582 = vmatpush1.msra.mxu0 %v59
    %583 = vmatprep.subr.mxu0 0.0
    %584 = vmatpush1.msra.mxu0 %v58
    %585 = vmatprep.subr.mxu0 0.0
    %586 = vmatpush1.msra.mxu0 %v57
    %587 = vmatprep.subr.mxu0 0.0
    %588 = vmatpush1.msra.mxu0 %v56
    %589 = vmatprep.subr.mxu0 0.0
    %590 = vmatpush1.msra.mxu0 %v55
    %591 = vmatprep.subr.mxu0 0.0
    %592 = vmatpush1.msra.mxu0 %v54
    %593 = vmatprep.subr.mxu0 0.0
    %594 = vmatpush1.msra.mxu0 %v53
    %595 = vmatprep.subr.mxu0 0.0
    %596 = vmatpush1.msra.mxu0 %v52
    %597 = vmatprep.subr.mxu0 0.0
    %598 = vmatpush1.msra.mxu0 %v51
    %599 = vmatprep.subr.mxu0 0.0
    %600 = vmatpush1.msra.mxu0 %v50
    %601 = vmatprep.subr.mxu0 0.0
    %602 = vmatpush1.msra.mxu0 %v49
    %603 = vmatprep.subr.mxu0 0.0
    %604 = vmatpush1.msra.mxu0 %v48
    %605 = vmatprep.subr.mxu0 0.0
    %606 = vmatpush1.msra.mxu0 %v47
    %607 = vmatprep.subr.mxu0 0.0
    %608 = vmatpush1.msra.mxu0 %v46
    %609 = vmatprep.subr.mxu0 0.0
    %610 = vmatpush1.msra.mxu0 %v45
    %611 = vmatprep.subr.mxu0 0.0
    %612 = vmatpush1.msra.mxu0 %v44
    %613 = vmatprep.subr.mxu0 0.0
    %614 = vmatpush2.msra.mxu0 0.0
    %615 = vmatprep.subr.mxu0 0.0
    %616 = vmatpush2.msra.mxu0 0.0
    %617 = vmatprep.subr.mxu0 0.0
    %618 = vmatpush2.msra.mxu0 0.0
    %619 = vmatprep.subr.mxu0 0.0
    %620 = vmatpush2.msra.mxu0 0.0
    %621 = vmatprep.subr.mxu0 0.0
    %622 = vmatpush2.msra.mxu0 0.0
    %623 = vmatprep.subr.mxu0 0.0
    %624 = vmatpush2.msra.mxu0 0.0
    %625 = vmatprep.subr.mxu0 0.0
    %626 = vmatpush2.msra.mxu0 0.0
    %627 = vmatprep.subr.mxu0 0.0
    %628 = vmatpush2.msra.mxu0 0.0
    %629 = vmatprep.subr.mxu0 0.0
    %630 = vmatpush2.msra.mxu0 0.0
    %631 = vmatprep.subr.mxu0 0.0
    %632 = vmatpush2.msra.mxu0 0.0
    %633 = vmatprep.subr.mxu0 0.0
    %634 = vmatpush2.msra.mxu0 0.0
    %635 = vmatprep.subr.mxu0 0.0
    %636 = vmatpush2.msra.mxu0 0.0
    %637 = vmatprep.subr.mxu0 0.0
    %638 = vmatpush2.msra.mxu0 0.0
    %639 = vmatprep.subr.mxu0 0.0
    %640 = vmatpush2.msra.mxu0 0.0
    %641 = vmatprep.subr.mxu0 0.0
    %642 = vmatpush2.msra.mxu0 0.0
    %643 = vmatprep.subr.mxu0 0.0
    %644 = vmatpush2.msra.mxu0 0.0
    %645 = vmatprep.mubr.f32.mxu0 0.0
    %646 = vmatmul.mubr.f32.gmra.mxu0 %v578
    %v647 = vpop.f32.mrf.mxu0
    %v648 = vadd.f32 0.0, %v647
    %v649 = vpop.f32.mrf.mxu0
    %650 = vdwg.mxu0
    %v651 = vadd.f32 %v580, %v648
    %v652 = vtanh.pop %v651
    %vm653 = vcmp.gt.s32.totalorder %v43, 4
    %v654 = vsel %vm653, 1, 0
    %655 = vset.pattern.permute.xlu0 0
    %656 = vperm.xlu0 %655, %v654
    %v657 = vpop.permute.xlu0 %656
    %vm658 = vcmp.eq.s32.totalorder %v657, 1
    %v659 = vsel %vm658, %v652, 0.0
    %v661 = vcombine.high %v659, %v659
    %v663 = vunpack.c.l.s4 1966171168
    %v664 = vunpack.c.0.s8 %v663
    %v665 = vlaneseq
    %v666 = vshrl.u32 %v665, 7
    %v667 = vsub.s32 %v664, %v666
    %v668 = vrot.slane %v659, %v667
    %v670 = vunpack.c.l.s4 1966171168
    %v671 = vunpack.c.0.s8 %v670
    %v672 = vlaneseq
    %v673 = vshrl.u32 %v672, 7
    %v674 = vsub.s32 %v671, %v673
    %v675 = vrot.slane %v661, %v674
    %v676 = vcombine.high %v668, %v668
    %v677 = vcombine.high %v675, %v675
    %v679 = vunpack.c.l.s4 1966171168
    %v680 = vunpack.c.0.s8 %v679
    %v681 = vlaneseq
    %v682 = vshrl.u32 %v681, 7
    %v683 = vsub.s32 %v680, %v682
    %v684 = vrot.slane %v668, %v683
    %v686 = vunpack.c.l.s4 1966171168
    %v687 = vunpack.c.0.s8 %v686
    %v688 = vlaneseq
    %v689 = vshrl.u32 %v688, 7
    %v690 = vsub.s32 %v687, %v689
    %v691 = vrot.slane %v675, %v690
    %v693 = vunpack.c.l.s4 1966171168
    %v694 = vunpack.c.0.s8 %v693
    %v695 = vlaneseq
    %v696 = vshrl.u32 %v695, 7
    %v697 = vsub.s32 %v694, %v696
    %v698 = vrot.slane %v676, %v697
    %v700 = vunpack.c.l.s4 1966171168
    %v701 = vunpack.c.0.s8 %v700
    %v702 = vlaneseq
    %v703 = vshrl.u32 %v702, 7
    %v704 = vsub.s32 %v701, %v703
    %v705 = vrot.slane %v677, %v704
    %v706 = vcombine.high %v684, %v684
    %v707 = vcombine.high %v691, %v691
    %v708 = vcombine.high %v698, %v698
    %v709 = vcombine.high %v705, %v705
    %718 = vst [vmem:[#allocation7 + $0x4] sm:$0x1] %v684
    %719 = vst [vmem:[#allocation7 + $0xc] sm:$0x1] %v698
    %720 = vst [vmem:[#allocation7 + $0x14] sm:$0x1] %v706
    %721 = vst [vmem:[#allocation7 + $0x1c] sm:$0x1] %v708
    %722 = vst [vmem:[#allocation7 + $0x24] sm:$0x1] %v691
    %723 = vst [vmem:[#allocation7 + $0x2c] sm:$0x1] %v705
    %724 = vst [vmem:[#allocation7 + $0x34] sm:$0x1] %v707
    %725 = vst [vmem:[#allocation7 + $0x3c] sm:$0x1] %v709
    %v726 = vsel %vm658, %v652, %v578
    %s727 = scalar_lea.vmem [#allocation2], 40
    %v728 = vld [vmem:[%s727] sm:$0xff]
    %729 = vmatprep.subr.mxu0 0.0
    %730 = vmatpush1.msra.mxu0 %v59
    %731 = vmatprep.subr.mxu0 0.0
    %732 = vmatpush1.msra.mxu0 %v58
    %733 = vmatprep.subr.mxu0 0.0
    %734 = vmatpush1.msra.mxu0 %v57
    %735 = vmatprep.subr.mxu0 0.0
    %736 = vmatpush1.msra.mxu0 %v56
    %737 = vmatprep.subr.mxu0 0.0
    %738 = vmatpush1.msra.mxu0 %v55
    %739 = vmatprep.subr.mxu0 0.0
    %740 = vmatpush1.msra.mxu0 %v54
    %741 = vmatprep.subr.mxu0 0.0
    %742 = vmatpush1.msra.mxu0 %v53
    %743 = vmatprep.subr.mxu0 0.0
    %744 = vmatpush1.msra.mxu0 %v52
    %745 = vmatprep.subr.mxu0 0.0
    %746 = vmatpush1.msra.mxu0 %v51
    %747 = vmatprep.subr.mxu0 0.0
    %748 = vmatpush1.msra.mxu0 %v50
    %749 = vmatprep.subr.mxu0 0.0
    %750 = vmatpush1.msra.mxu0 %v49
    %751 = vmatprep.subr.mxu0 0.0
    %752 = vmatpush1.msra.mxu0 %v48
    %753 = vmatprep.subr.mxu0 0.0
    %754 = vmatpush1.msra.mxu0 %v47
    %755 = vmatprep.subr.mxu0 0.0
    %756 = vmatpush1.msra.mxu0 %v46
    %757 = vmatprep.subr.mxu0 0.0
    %758 = vmatpush1.msra.mxu0 %v45
    %759 = vmatprep.subr.mxu0 0.0
    %760 = vmatpush1.msra.mxu0 %v44
    %761 = vmatprep.subr.mxu0 0.0
    %762 = vmatpush2.msra.mxu0 0.0
    %763 = vmatprep.subr.mxu0 0.0
    %764 = vmatpush2.msra.mxu0 0.0
    %765 = vmatprep.subr.mxu0 0.0
    %766 = vmatpush2.msra.mxu0 0.0
    %767 = vmatprep.subr.mxu0 0.0
    %768 = vmatpush2.msra.mxu0 0.0
    %769 = vmatprep.subr.mxu0 0.0
    %770 = vmatpush2.msra.mxu0 0.0
    %771 = vmatprep.subr.mxu0 0.0
    %772 = vmatpush2.msra.mxu0 0.0
    %773 = vmatprep.subr.mxu0 0.0
    %774 = vmatpush2.msra.mxu0 0.0
    %775 = vmatprep.subr.mxu0 0.0
    %776 = vmatpush2.msra.mxu0 0.0
    %777 = vmatprep.subr.mxu0 0.0
    %778 = vmatpush2.msra.mxu0 0.0
    %779 = vmatprep.subr.mxu0 0.0
    %780 = vmatpush2.msra.mxu0 0.0
    %781 = vmatprep.subr.mxu0 0.0
    %782 = vmatpush2.msra.mxu0 0.0
    %783 = vmatprep.subr.mxu0 0.0
    %784 = vmatpush2.msra.mxu0 0.0
    %785 = vmatprep.subr.mxu0 0.0
    %786 = vmatpush2.msra.mxu0 0.0
    %787 = vmatprep.subr.mxu0 0.0
    %788 = vmatpush2.msra.mxu0 0.0
    %789 = vmatprep.subr.mxu0 0.0
    %790 = vmatpush2.msra.mxu0 0.0
    %791 = vmatprep.subr.mxu0 0.0
    %792 = vmatpush2.msra.mxu0 0.0
    %793 = vmatprep.mubr.f32.mxu0 0.0
    %794 = vmatmul.mubr.f32.gmra.mxu0 %v726
    %v795 = vpop.f32.mrf.mxu0
    %v796 = vadd.f32 0.0, %v795
    %v797 = vpop.f32.mrf.mxu0
    %798 = vdwg.mxu0
    %v799 = vadd.f32 %v728, %v796
    %v800 = vtanh.pop %v799
    %vm801 = vcmp.gt.s32.totalorder %v43, 5
    %v802 = vsel %vm801, 1, 0
    %803 = vset.pattern.permute.xlu0 0
    %804 = vperm.xlu0 %803, %v802
    %v805 = vpop.permute.xlu0 %804
    %vm806 = vcmp.eq.s32.totalorder %v805, 1
    %v807 = vsel %vm806, %v800, 0.0
    %v809 = vcombine.high %v807, %v807
    %v811 = vunpack.c.l.s4 1966171168
    %v812 = vunpack.c.0.s8 %v811
    %v813 = vlaneseq
    %v814 = vshrl.u32 %v813, 7
    %v815 = vsub.s32 %v812, %v814
    %v816 = vrot.slane %v807, %v815
    %v818 = vunpack.c.l.s4 1966171168
    %v819 = vunpack.c.0.s8 %v818
    %v820 = vlaneseq
    %v821 = vshrl.u32 %v820, 7
    %v822 = vsub.s32 %v819, %v821
    %v823 = vrot.slane %v809, %v822
    %v824 = vcombine.high %v816, %v816
    %v825 = vcombine.high %v823, %v823
    %v827 = vunpack.c.l.s4 1966171168
    %v828 = vunpack.c.0.s8 %v827
    %v829 = vlaneseq
    %v830 = vshrl.u32 %v829, 7
    %v831 = vsub.s32 %v828, %v830
    %v832 = vrot.slane %v816, %v831
    %v834 = vunpack.c.l.s4 1966171168
    %v835 = vunpack.c.0.s8 %v834
    %v836 = vlaneseq
    %v837 = vshrl.u32 %v836, 7
    %v838 = vsub.s32 %v835, %v837
    %v839 = vrot.slane %v823, %v838
    %v841 = vunpack.c.l.s4 1966171168
    %v842 = vunpack.c.0.s8 %v841
    %v843 = vlaneseq
    %v844 = vshrl.u32 %v843, 7
    %v845 = vsub.s32 %v842, %v844
    %v846 = vrot.slane %v824, %v845
    %v848 = vunpack.c.l.s4 1966171168
    %v849 = vunpack.c.0.s8 %v848
    %v850 = vlaneseq
    %v851 = vshrl.u32 %v850, 7
    %v852 = vsub.s32 %v849, %v851
    %v853 = vrot.slane %v825, %v852
    %v854 = vcombine.high %v832, %v832
    %v855 = vcombine.high %v839, %v839
    %v856 = vcombine.high %v846, %v846
    %v857 = vcombine.high %v853, %v853
    %866 = vst [vmem:[#allocation7 + $0x5] sm:$0x1] %v832
    %867 = vst [vmem:[#allocation7 + $0xd] sm:$0x1] %v846
    %868 = vst [vmem:[#allocation7 + $0x15] sm:$0x1] %v854
    %869 = vst [vmem:[#allocation7 + $0x1d] sm:$0x1] %v856
    %870 = vst [vmem:[#allocation7 + $0x25] sm:$0x1] %v839
    %871 = vst [vmem:[#allocation7 + $0x2d] sm:$0x1] %v853
    %872 = vst [vmem:[#allocation7 + $0x35] sm:$0x1] %v855
    %873 = vst [vmem:[#allocation7 + $0x3d] sm:$0x1] %v857
    %v874 = vsel %vm806, %v800, %v726
    %s875 = scalar_lea.vmem [#allocation2], 48
    %v876 = vld [vmem:[%s875] sm:$0xff]
    %877 = vmatprep.subr.mxu0 0.0
    %878 = vmatpush1.msra.mxu0 %v59
    %879 = vmatprep.subr.mxu0 0.0
    %880 = vmatpush1.msra.mxu0 %v58
    %881 = vmatprep.subr.mxu0 0.0
    %882 = vmatpush1.msra.mxu0 %v57
    %883 = vmatprep.subr.mxu0 0.0
    %884 = vmatpush1.msra.mxu0 %v56
    %885 = vmatprep.subr.mxu0 0.0
    %886 = vmatpush1.msra.mxu0 %v55
    %887 = vmatprep.subr.mxu0 0.0
    %888 = vmatpush1.msra.mxu0 %v54
    %889 = vmatprep.subr.mxu0 0.0
    %890 = vmatpush1.msra.mxu0 %v53
    %891 = vmatprep.subr.mxu0 0.0
    %892 = vmatpush1.msra.mxu0 %v52
    %893 = vmatprep.subr.mxu0 0.0
    %894 = vmatpush1.msra.mxu0 %v51
    %895 = vmatprep.subr.mxu0 0.0
    %896 = vmatpush1.msra.mxu0 %v50
    %897 = vmatprep.subr.mxu0 0.0
    %898 = vmatpush1.msra.mxu0 %v49
    %899 = vmatprep.subr.mxu0 0.0
    %900 = vmatpush1.msra.mxu0 %v48
    %901 = vmatprep.subr.mxu0 0.0
    %902 = vmatpush1.msra.mxu0 %v47
    %903 = vmatprep.subr.mxu0 0.0
    %904 = vmatpush1.msra.mxu0 %v46
    %905 = vmatprep.subr.mxu0 0.0
    %906 = vmatpush1.msra.mxu0 %v45
    %907 = vmatprep.subr.mxu0 0.0
    %908 = vmatpush1.msra.mxu0 %v44
    %909 = vmatprep.subr.mxu0 0.0
    %910 = vmatpush2.msra.mxu0 0.0
    %911 = vmatprep.subr.mxu0 0.0
    %912 = vmatpush2.msra.mxu0 0.0
    %913 = vmatprep.subr.mxu0 0.0
    %914 = vmatpush2.msra.mxu0 0.0
    %915 = vmatprep.subr.mxu0 0.0
    %916 = vmatpush2.msra.mxu0 0.0
    %917 = vmatprep.subr.mxu0 0.0
    %918 = vmatpush2.msra.mxu0 0.0
    %919 = vmatprep.subr.mxu0 0.0
    %920 = vmatpush2.msra.mxu0 0.0
    %921 = vmatprep.subr.mxu0 0.0
    %922 = vmatpush2.msra.mxu0 0.0
    %923 = vmatprep.subr.mxu0 0.0
    %924 = vmatpush2.msra.mxu0 0.0
    %925 = vmatprep.subr.mxu0 0.0
    %926 = vmatpush2.msra.mxu0 0.0
    %927 = vmatprep.subr.mxu0 0.0
    %928 = vmatpush2.msra.mxu0 0.0
    %929 = vmatprep.subr.mxu0 0.0
    %930 = vmatpush2.msra.mxu0 0.0
    %931 = vmatprep.subr.mxu0 0.0
    %932 = vmatpush2.msra.mxu0 0.0
    %933 = vmatprep.subr.mxu0 0.0
    %934 = vmatpush2.msra.mxu0 0.0
    %935 = vmatprep.subr.mxu0 0.0
    %936 = vmatpush2.msra.mxu0 0.0
    %937 = vmatprep.subr.mxu0 0.0
    %938 = vmatpush2.msra.mxu0 0.0
    %939 = vmatprep.subr.mxu0 0.0
    %940 = vmatpush2.msra.mxu0 0.0
    %941 = vmatprep.mubr.f32.mxu0 0.0
    %942 = vmatmul.mubr.f32.gmra.mxu0 %v874
    %v943 = vpop.f32.mrf.mxu0
    %v944 = vadd.f32 0.0, %v943
    %v945 = vpop.f32.mrf.mxu0
    %946 = vdwg.mxu0
    %v947 = vadd.f32 %v876, %v944
    %v948 = vtanh.pop %v947
    %vm949 = vcmp.gt.s32.totalorder %v43, 6
    %v950 = vsel %vm949, 1, 0
    %951 = vset.pattern.permute.xlu0 0
    %952 = vperm.xlu0 %951, %v950
    %v953 = vpop.permute.xlu0 %952
    %vm954 = vcmp.eq.s32.totalorder %v953, 1
    %v955 = vsel %vm954, %v948, 0.0
    %v957 = vcombine.high %v955, %v955
    %v959 = vunpack.c.l.s4 1966171168
    %v960 = vunpack.c.0.s8 %v959
    %v961 = vlaneseq
    %v962 = vshrl.u32 %v961, 7
    %v963 = vsub.s32 %v960, %v962
    %v964 = vrot.slane %v955, %v963
    %v966 = vunpack.c.l.s4 1966171168
    %v967 = vunpack.c.0.s8 %v966
    %v968 = vlaneseq
    %v969 = vshrl.u32 %v968, 7
    %v970 = vsub.s32 %v967, %v969
    %v971 = vrot.slane %v957, %v970
    %v972 = vcombine.high %v964, %v964
    %v973 = vcombine.high %v971, %v971
    %v975 = vunpack.c.l.s4 1966171168
    %v976 = vunpack.c.0.s8 %v975
    %v977 = vlaneseq
    %v978 = vshrl.u32 %v977, 7
    %v979 = vsub.s32 %v976, %v978
    %v980 = vrot.slane %v964, %v979
    %v982 = vunpack.c.l.s4 1966171168
    %v983 = vunpack.c.0.s8 %v982
    %v984 = vlaneseq
    %v985 = vshrl.u32 %v984, 7
    %v986 = vsub.s32 %v983, %v985
    %v987 = vrot.slane %v971, %v986
    %v989 = vunpack.c.l.s4 1966171168
    %v990 = vunpack.c.0.s8 %v989
    %v991 = vlaneseq
    %v992 = vshrl.u32 %v991, 7
    %v993 = vsub.s32 %v990, %v992
    %v994 = vrot.slane %v972, %v993
    %v996 = vunpack.c.l.s4 1966171168
    %v997 = vunpack.c.0.s8 %v996
    %v998 = vlaneseq
    %v999 = vshrl.u32 %v998, 7
    %v1000 = vsub.s32 %v997, %v999
    %v1001 = vrot.slane %v973, %v1000
    %v1002 = vcombine.high %v980, %v980
    %v1003 = vcombine.high %v987, %v987
    %v1004 = vcombine.high %v994, %v994
    %v1005 = vcombine.high %v1001, %v1001
    %1014 = vst [vmem:[#allocation7 + $0x6] sm:$0x1] %v980
    %1015 = vst [vmem:[#allocation7 + $0xe] sm:$0x1] %v994
    %1016 = vst [vmem:[#allocation7 + $0x16] sm:$0x1] %v1002
    %1017 = vst [vmem:[#allocation7 + $0x1e] sm:$0x1] %v1004
    %1018 = vst [vmem:[#allocation7 + $0x26] sm:$0x1] %v987
    %1019 = vst [vmem:[#allocation7 + $0x2e] sm:$0x1] %v1001
    %1020 = vst [vmem:[#allocation7 + $0x36] sm:$0x1] %v1003
    %1021 = vst [vmem:[#allocation7 + $0x3e] sm:$0x1] %v1005
    %v1022 = vsel %vm954, %v948, %v874
    %s1023 = scalar_lea.vmem [#allocation2], 56
    %v1024 = vld [vmem:[%s1023] sm:$0xff]
    %1025 = vmatprep.subr.mxu0 0.0
    %1026 = vmatpush1.msra.mxu0 %v59
    %1027 = vmatprep.subr.mxu0 0.0
    %1028 = vmatpush1.msra.mxu0 %v58
    %1029 = vmatprep.subr.mxu0 0.0
    %1030 = vmatpush1.msra.mxu0 %v57
    %1031 = vmatprep.subr.mxu0 0.0
    %1032 = vmatpush1.msra.mxu0 %v56
    %1033 = vmatprep.subr.mxu0 0.0
    %1034 = vmatpush1.msra.mxu0 %v55
    %1035 = vmatprep.subr.mxu0 0.0
    %1036 = vmatpush1.msra.mxu0 %v54
    %1037 = vmatprep.subr.mxu0 0.0
    %1038 = vmatpush1.msra.mxu0 %v53
    %1039 = vmatprep.subr.mxu0 0.0
    %1040 = vmatpush1.msra.mxu0 %v52
    %1041 = vmatprep.subr.mxu0 0.0
    %1042 = vmatpush1.msra.mxu0 %v51
    %1043 = vmatprep.subr.mxu0 0.0
    %1044 = vmatpush1.msra.mxu0 %v50
    %1045 = vmatprep.subr.mxu0 0.0
    %1046 = vmatpush1.msra.mxu0 %v49
    %1047 = vmatprep.subr.mxu0 0.0
    %1048 = vmatpush1.msra.mxu0 %v48
    %1049 = vmatprep.subr.mxu0 0.0
    %1050 = vmatpush1.msra.mxu0 %v47
    %1051 = vmatprep.subr.mxu0 0.0
    %1052 = vmatpush1.msra.mxu0 %v46
    %1053 = vmatprep.subr.mxu0 0.0
    %1054 = vmatpush1.msra.mxu0 %v45
    %1055 = vmatprep.subr.mxu0 0.0
    %1056 = vmatpush1.msra.mxu0 %v44
    %1057 = vmatprep.subr.mxu0 0.0
    %1058 = vmatpush2.msra.mxu0 0.0
    %1059 = vmatprep.subr.mxu0 0.0
    %1060 = vmatpush2.msra.mxu0 0.0
    %1061 = vmatprep.subr.mxu0 0.0
    %1062 = vmatpush2.msra.mxu0 0.0
    %1063 = vmatprep.subr.mxu0 0.0
    %1064 = vmatpush2.msra.mxu0 0.0
    %1065 = vmatprep.subr.mxu0 0.0
    %1066 = vmatpush2.msra.mxu0 0.0
    %1067 = vmatprep.subr.mxu0 0.0
    %1068 = vmatpush2.msra.mxu0 0.0
    %1069 = vmatprep.subr.mxu0 0.0
    %1070 = vmatpush2.msra.mxu0 0.0
    %1071 = vmatprep.subr.mxu0 0.0
    %1072 = vmatpush2.msra.mxu0 0.0
    %1073 = vmatprep.subr.mxu0 0.0
    %1074 = vmatpush2.msra.mxu0 0.0
    %1075 = vmatprep.subr.mxu0 0.0
    %1076 = vmatpush2.msra.mxu0 0.0
    %1077 = vmatprep.subr.mxu0 0.0
    %1078 = vmatpush2.msra.mxu0 0.0
    %1079 = vmatprep.subr.mxu0 0.0
    %1080 = vmatpush2.msra.mxu0 0.0
    %1081 = vmatprep.subr.mxu0 0.0
    %1082 = vmatpush2.msra.mxu0 0.0
    %1083 = vmatprep.subr.mxu0 0.0
    %1084 = vmatpush2.msra.mxu0 0.0
    %1085 = vmatprep.subr.mxu0 0.0
    %1086 = vmatpush2.msra.mxu0 0.0
    %1087 = vmatprep.subr.mxu0 0.0
    %1088 = vmatpush2.msra.mxu0 0.0
    %1089 = vmatprep.mubr.f32.mxu0 0.0
    %1090 = vmatmul.mubr.f32.gmra.mxu0 %v1022
    %v1091 = vpop.f32.mrf.mxu0
    %v1092 = vadd.f32 0.0, %v1091
    %v1093 = vpop.f32.mrf.mxu0
    %1094 = vdwg.mxu0
    %v1095 = vadd.f32 %v1024, %v1092
    %v1096 = vtanh.pop %v1095
    %vm1097 = vcmp.gt.s32.totalorder %v43, 7
    %v1098 = vsel %vm1097, 1, 0
    %1099 = vset.pattern.permute.xlu0 0
    %1100 = vperm.xlu0 %1099, %v1098
    %v1101 = vpop.permute.xlu0 %1100
    %vm1102 = vcmp.eq.s32.totalorder %v1101, 1
    %v1103 = vsel %vm1102, %v1096, 0.0
    %v1105 = vcombine.high %v1103, %v1103
    %v1107 = vunpack.c.l.s4 1966171168
    %v1108 = vunpack.c.0.s8 %v1107
    %v1109 = vlaneseq
    %v1110 = vshrl.u32 %v1109, 7
    %v1111 = vsub.s32 %v1108, %v1110
    %v1112 = vrot.slane %v1103, %v1111
    %v1114 = vunpack.c.l.s4 1966171168
    %v1115 = vunpack.c.0.s8 %v1114
    %v1116 = vlaneseq
    %v1117 = vshrl.u32 %v1116, 7
    %v1118 = vsub.s32 %v1115, %v1117
    %v1119 = vrot.slane %v1105, %v1118
    %v1120 = vcombine.high %v1112, %v1112
    %v1121 = vcombine.high %v1119, %v1119
    %v1123 = vunpack.c.l.s4 1966171168
    %v1124 = vunpack.c.0.s8 %v1123
    %v1125 = vlaneseq
    %v1126 = vshrl.u32 %v1125, 7
    %v1127 = vsub.s32 %v1124, %v1126
    %v1128 = vrot.slane %v1112, %v1127
    %v1130 = vunpack.c.l.s4 1966171168
    %v1131 = vunpack.c.0.s8 %v1130
    %v1132 = vlaneseq
    %v1133 = vshrl.u32 %v1132, 7
    %v1134 = vsub.s32 %v1131, %v1133
    %v1135 = vrot.slane %v1119, %v1134
    %v1137 = vunpack.c.l.s4 1966171168
    %v1138 = vunpack.c.0.s8 %v1137
    %v1139 = vlaneseq
    %v1140 = vshrl.u32 %v1139, 7
    %v1141 = vsub.s32 %v1138, %v1140
    %v1142 = vrot.slane %v1120, %v1141
    %v1144 = vunpack.c.l.s4 1966171168
    %v1145 = vunpack.c.0.s8 %v1144
    %v1146 = vlaneseq
    %v1147 = vshrl.u32 %v1146, 7
    %v1148 = vsub.s32 %v1145, %v1147
    %v1149 = vrot.slane %v1121, %v1148
    %v1150 = vcombine.high %v1128, %v1128
    %v1151 = vcombine.high %v1135, %v1135
    %v1152 = vcombine.high %v1142, %v1142
    %v1153 = vcombine.high %v1149, %v1149
    %1162 = vst [vmem:[#allocation7 + $0x7] sm:$0x1] %v1128
    %1163 = vst [vmem:[#allocation7 + $0xf] sm:$0x1] %v1142
    %1164 = vst [vmem:[#allocation7 + $0x17] sm:$0x1] %v1150
    %1165 = vst [vmem:[#allocation7 + $0x1f] sm:$0x1] %v1152
    %1166 = vst [vmem:[#allocation7 + $0x27] sm:$0x1] %v1135
    %1167 = vst [vmem:[#allocation7 + $0x2f] sm:$0x1] %v1149
    %1168 = vst [vmem:[#allocation7 + $0x37] sm:$0x1] %v1151
    %1169 = vst [vmem:[#allocation7 + $0x3f] sm:$0x1] %v1153
    // Predicated region
    $region22: #{tpu_custom_call.1} parent=1 // pred_check
      _
    $region23: #{tpu_custom_call.1} parent=1 // pred_check_branch
      %1171 = sbr.rel (0) target = $region25
    $region24: #{tpu_custom_call.1} parent=1 // pred_region
      %s1173 = ssub.s32 1024, 1024
      %1174 = vsyncadd [#allocation4], %s1173
      %s1175 = sshll.u32 [#allocation7], 4
      %s1176 = int_to_ptr.vmem [resolvable:$true] %s1175
      %1181 = dma.vmem_to_hbm [thread:$0]  %s1176, 1024, %s3, [#allocation4], 128, 128, 8
    $region25: #{tpu_custom_call.1} parent=1 // pred_fallthru
      _
    // Predicated region
    $region26: #{tpu_custom_call.1} parent=1 // pred_check
      _
    $region27: #{tpu_custom_call.1} parent=1 // pred_check_branch
      %1183 = sbr.rel (0) target = $region29
    $region28: #{tpu_custom_call.1} parent=1 // pred_region
      %1184 = dma.done [#allocation4], 1024
    $region29: #{tpu_custom_call.1} parent=1 // pred_fallthru
      _
    %1185 = vsyncpa [#allocation3], 1
    %1186 = vsyncpa [#allocation6], 1
    %1187 = vsyncpa [#allocation4], 1

</llo_original>
